<compile_context>
chip_gen: v6e
topology: v6e:2x2x1
jax: 0.10.0
libtpu: 0.0.40
codegen_flags: <defaults>
</compile_context>

<pallas_src>
import jax
import jax.numpy as jnp
from jax.experimental import pallas as pl
from jax.experimental.pallas import tpu as pltpu

FEAT = 128  # lane-dense padded feature width (one full f32 vreg lane dim)


def fcn_kernel(x_ref, vec_ref, w_ref, o_ref):
    """x_ref  : (tb, FEAT)      lane-packed input (pack samples per row, each
                                sample's scalar replicated over its lane group)
       vec_ref: (L+2, 1, FEAT)  [w_in_tiled, b_in_tiled, b_1, ..., b_L] (f32)
       w_ref  : (L, FEAT, FEAT) block-diagonal weights (f32 or bf16);
                                last one is the output layer.
    """
    mm_dtype = w_ref.dtype  # matmul operand dtype (f32 or bf16)

    # Input layer (N_INPUT == 1): pure VPU broadcast-FMA, no MXU / cross-lane op.
    h = jnp.tanh(x_ref[...] * vec_ref[0] + vec_ref[1])            # (tb, FEAT) f32

    n_mat = w_ref.shape[0]                                        # static
    # Hidden layers: Linear + Tanh (full 128x128 MXU tiles, f32 accumulation).
    for l in range(n_mat - 1):                                    # static unroll
        h = jnp.tanh(
            jnp.dot(h.astype(mm_dtype), w_ref[l],
                    preferred_element_type=jnp.float32)
            + vec_ref[l + 2]
        )
    # Output layer: Linear, no activation; lane-dense full-width vst.
    o_ref[...] = (
        jnp.dot(h.astype(mm_dtype), w_ref[n_mat - 1],
                preferred_element_type=jnp.float32)
        + vec_ref[n_mat + 1]
    ).astype(o_ref.dtype)


def fcn_forward(x, packed, *, tb=None):
    """x: (B, 1) f32.  packed = (vec_stack, w_stack, (n_output, pack, group)).

    tb=None -> single grid step over the whole packed batch (best for v5e/v6e).
    For v7x, pass tb = padded_rows // (2*k) so the grid splits evenly over 2 TCs.
    """
    vec_stack, w_stack, (n_output, pack, group) = packed
    B, n_input = x.shape
    assert n_input == 1, "broadcast-FMA input path assumes N_INPUT == 1"

    rows = pl.cdiv(B, pack)                 # packed rows (pack samples per row)
    if tb is None:
        rows_p = pl.cdiv(rows, 8) * 8       # sublane-align; single grid step
        tb = rows_p
    else:
        assert tb % 8 == 0, "row tile must be sublane-aligned"
        rows_p = pl.cdiv(rows, tb) * tb
    bp = rows_p * pack

    x_flat = x[:, 0]
    if bp != B:
        # Zero-pad the batch; padded samples give finite garbage, sliced off below.
        x_flat = jnp.pad(x_flat, (0, bp - B))

    # Lane-dense packed input: row r, lane-group g holds x[pack*r + g] on all
    # `group` lanes (prepared here so the kernel's first op is a pure VPU FMA).
    x_packed = jnp.repeat(x_flat.reshape(rows_p, pack), group, axis=1)  # (rows_p, FEAT)

    out = pl.pallas_call(
        fcn_kernel,
        out_shape=jax.ShapeDtypeStruct((rows_p, FEAT), jnp.float32),
        grid_spec=pltpu.PrefetchScalarGridSpec(
            num_scalar_prefetch=0,
            grid=(rows_p // tb,),
            in_specs=[
                pl.BlockSpec((tb, FEAT), lambda i: (i, 0)),
                # Constant index_map -> packed weights stay resident in VMEM.
                pl.BlockSpec(vec_stack.shape, lambda i: (0, 0, 0)),
                pl.BlockSpec(w_stack.shape, lambda i: (0, 0, 0)),
            ],
            out_specs=pl.BlockSpec((tb, FEAT), lambda i: (i, 0)),
        ),
        compiler_params=pltpu.CompilerParams(
            dimension_semantics=("parallel",)),
    )(x_packed, vec_stack, w_stack)

    # Un-pack: (rows_p, FEAT) -> (rows_p*pack, group); each sample's outputs sit
    # in the first n_output lanes of its group.
    y = out.reshape(rows_p * pack, group)
    return y[:B, :n_output]


def init_fcn_params(key, n_input, n_output, n_hidden, n_layers):
    """PyTorch-style init U(-1/sqrt(fan_in), 1/sqrt(fan_in)).

    Returns a list of (w, b) with w stored as (in_features, out_features).
    """
    dims = [n_input] + [n_hidden] * n_layers + [n_output]
    keys = jax.random.split(key, 2 * (n_layers + 1))
    layers = []
    for i in range(n_layers + 1):
        fan_in = dims[i]
        bound = 1.0 / jnp.sqrt(jnp.float32(fan_in))
        w = jax.random.uniform(keys[2 * i], (dims[i], dims[i + 1]),
                               jnp.float32, -bound, bound)
        b = jax.random.uniform(keys[2 * i + 1], (1, dims[i + 1]),
                               jnp.float32, -bound, bound)
        layers.append((w, b))
    return layers


def pack_fcn_params(layers, *, matmul_dtype=jnp.float32):
    """Pack natural (w, b) layers into lane-packed block-diagonal stacks.

    pack  = samples per 128-lane row (power of two), group = FEAT // pack.
    vec_stack: (L+2, 1, FEAT)  f32  = [w_in_tiled, b_in_tiled, b_1, ..., b_L]
    w_stack  : (L,   FEAT, FEAT) matmul_dtype, block-diag of `pack` weight copies.
    """
    (w0, b0) = layers[0]
    assert w0.shape[0] == 1, "input layer packed as a broadcast row (N_INPUT==1)"
    n_hidden = w0.shape[1]
    n_output = layers[-1][0].shape[1]
    m = max(n_hidden, n_output)
    assert m <= FEAT

    pack = 1
    while (pack * 2) * m <= FEAT:   # largest power-of-two packing that fits
        pack *= 2
    group = FEAT // pack            # e.g. n_hidden=32 -> pack=4, group=32

    def tile_vec(v):  # (1, n) -> (1, FEAT): zero-pad to group width, tile pack x
        vp = jnp.zeros((1, group), jnp.float32).at[:, : v.shape[1]].set(v)
        return jnp.tile(vp, (1, pack))

    def blockdiag(w):  # (k, n) -> (FEAT, FEAT): pack copies on the diagonal
        blk = jnp.zeros((group, group), jnp.float32).at[
            : w.shape[0], : w.shape[1]].set(w)
        return jnp.kron(jnp.eye(pack, dtype=jnp.float32), blk)

    vecs = [tile_vec(w0), tile_vec(b0)]
    mats = []
    for (w, b) in layers[1:]:
        mats.append(blockdiag(w))
        vecs.append(tile_vec(b))
    vec_stack = jnp.stack(vecs)                          # (L+2, 1, FEAT) f32
    w_stack = jnp.stack(mats).astype(matmul_dtype)       # (L,   FEAT, FEAT)
    return vec_stack, w_stack, (n_output, pack, group)


def fcn_reference(x, layers):
    """Pure-JAX reference matching the PyTorch FCN.forward semantics."""
    h = x
    for i, (w, b) in enumerate(layers):
        h = h @ w + b
        if i < len(layers) - 1:
            h = jnp.tanh(h)
    return h


if __name__ == "__main__":
    # Shapes from the module's usage: x = torch.linspace(0, 1, 500).view(-1, 1)
    B, N_INPUT, N_OUTPUT, N_HIDDEN, N_LAYERS = 500, 1, 1, 32, 4

    key = jax.random.PRNGKey(0)
    layers = init_fcn_params(key, N_INPUT, N_OUTPUT, N_HIDDEN, N_LAYERS)
    x = jnp.linspace(0.0, 1.0, B, dtype=jnp.float32).reshape(-1, 1)
    ref = fcn_reference(x, layers)

    # f32 matmul operands (full-precision path, default).
    packed_f32 = pack_fcn_params(layers, matmul_dtype=jnp.float32)
    out_f32 = jax.block_until_ready(fcn_forward(x, packed_f32))
    assert out_f32.shape == (B, N_OUTPUT)
    assert jnp.allclose(out_f32, ref, atol=1e-5, rtol=1e-5)

    # bf16 matmul operands (MXU-optimized path), validated at looser tolerance.
    packed_bf16 = pack_fcn_params(layers, matmul_dtype=jnp.bfloat16)
    out_bf16 = jax.block_until_ready(fcn_forward(x, packed_bf16))
    assert out_bf16.shape == (B, N_OUTPUT)
    assert jnp.allclose(out_bf16, ref, atol=3e-2, rtol=3e-2)

    print("KERNEL_OK")
</pallas_src>

<mosaic_0001>
module attributes {stable_mosaic.version = 11 : i64} {
  func.func @fcn_kernel(%arg0: i32, %arg1: memref<128x128xf32, #tpu.memory_space<vmem>>, %arg2: memref<6x1x128xf32, #tpu.memory_space<vmem>>, %arg3: memref<4x128x128xf32, #tpu.memory_space<vmem>>, %arg4: memref<128x128xf32, #tpu.memory_space<vmem>>) attributes {dimension_semantics = [#tpu.dimension_semantics<parallel>], iteration_bounds = array<i64: 1>, scalar_prefetch = 0 : i64, scratch_operands = 0 : i64, tpu.core_type = #tpu.core_type<tc>, window_params = [{transform_indices = @transform_0, window_bounds = array<i64: 128, 128>}, {pipeline_mode = #tpu.pipeline_mode<synchronous>, transform_indices = @transform_1, window_bounds = array<i64: 6, 1, 128>}, {pipeline_mode = #tpu.pipeline_mode<synchronous>, transform_indices = @transform_2, window_bounds = array<i64: 4, 128, 128>}, {transform_indices = @transform_3, window_bounds = array<i64: 128, 128>}]} {
    %c0 = arith.constant 0 : index
    %c0_0 = arith.constant 0 : index
    %0 = vector.load %arg1[%c0, %c0_0] : memref<128x128xf32, #tpu.memory_space<vmem>>, vector<128x128xf32>
    %c0_1 = arith.constant 0 : index
    %c0_2 = arith.constant 0 : index
    %c0_3 = arith.constant 0 : index
    %1 = vector.load %arg2[%c0_1, %c0_2, %c0_3] : memref<6x1x128xf32, #tpu.memory_space<vmem>>, vector<1x1x128xf32>
    %2 = vector.shape_cast %1 : vector<1x1x128xf32> to vector<1x128xf32>
    %3 = vector.broadcast %2 : vector<1x128xf32> to vector<128x128xf32>
    %4 = arith.mulf %0, %3 : vector<128x128xf32>
    %c1 = arith.constant 1 : index
    %c0_4 = arith.constant 0 : index
    %c0_5 = arith.constant 0 : index
    %5 = vector.load %arg2[%c1, %c0_4, %c0_5] : memref<6x1x128xf32, #tpu.memory_space<vmem>>, vector<1x1x128xf32>
    %6 = vector.shape_cast %5 : vector<1x1x128xf32> to vector<1x128xf32>
    %7 = vector.broadcast %6 : vector<1x128xf32> to vector<128x128xf32>
    %8 = arith.addf %4, %7 : vector<128x128xf32>
    %9 = math.tanh %8 : vector<128x128xf32>
    %c0_6 = arith.constant 0 : index
    %c0_7 = arith.constant 0 : index
    %c0_8 = arith.constant 0 : index
    %10 = vector.load %arg3[%c0_6, %c0_7, %c0_8] : memref<4x128x128xf32, #tpu.memory_space<vmem>>, vector<1x128x128xf32>
    %11 = vector.shape_cast %10 : vector<1x128x128xf32> to vector<128x128xf32>
    %cst = arith.constant dense<0.000000e+00> : vector<128x128xf32>
    %12 = tpu.matmul %9, %11, %cst {dimension_numbers = #tpu.dot_dimension_numbers<[1], [0], [0], [1], [0, 0, 1, 1], [], []>} : vector<128x128xf32>, vector<128x128xf32>, vector<128x128xf32> -> vector<128x128xf32>
    %c2 = arith.constant 2 : index
    %c0_9 = arith.constant 0 : index
    %c0_10 = arith.constant 0 : index
    %13 = vector.load %arg2[%c2, %c0_9, %c0_10] : memref<6x1x128xf32, #tpu.memory_space<vmem>>, vector<1x1x128xf32>
    %14 = vector.shape_cast %13 : vector<1x1x128xf32> to vector<1x128xf32>
    %15 = vector.broadcast %14 : vector<1x128xf32> to vector<128x128xf32>
    %16 = arith.addf %12, %15 : vector<128x128xf32>
    %17 = math.tanh %16 : vector<128x128xf32>
    %c1_11 = arith.constant 1 : index
    %c0_12 = arith.constant 0 : index
    %c0_13 = arith.constant 0 : index
    %18 = vector.load %arg3[%c1_11, %c0_12, %c0_13] : memref<4x128x128xf32, #tpu.memory_space<vmem>>, vector<1x128x128xf32>
    %19 = vector.shape_cast %18 : vector<1x128x128xf32> to vector<128x128xf32>
    %cst_14 = arith.constant dense<0.000000e+00> : vector<128x128xf32>
    %20 = tpu.matmul %17, %19, %cst_14 {dimension_numbers = #tpu.dot_dimension_numbers<[1], [0], [0], [1], [0, 0, 1, 1], [], []>} : vector<128x128xf32>, vector<128x128xf32>, vector<128x128xf32> -> vector<128x128xf32>
    %c3 = arith.constant 3 : index
    %c0_15 = arith.constant 0 : index
    %c0_16 = arith.constant 0 : index
    %21 = vector.load %arg2[%c3, %c0_15, %c0_16] : memref<6x1x128xf32, #tpu.memory_space<vmem>>, vector<1x1x128xf32>
    %22 = vector.shape_cast %21 : vector<1x1x128xf32> to vector<1x128xf32>
    %23 = vector.broadcast %22 : vector<1x128xf32> to vector<128x128xf32>
    %24 = arith.addf %20, %23 : vector<128x128xf32>
    %25 = math.tanh %24 : vector<128x128xf32>
    %c2_17 = arith.constant 2 : index
    %c0_18 = arith.constant 0 : index
    %c0_19 = arith.constant 0 : index
    %26 = vector.load %arg3[%c2_17, %c0_18, %c0_19] : memref<4x128x128xf32, #tpu.memory_space<vmem>>, vector<1x128x128xf32>
    %27 = vector.shape_cast %26 : vector<1x128x128xf32> to vector<128x128xf32>
    %cst_20 = arith.constant dense<0.000000e+00> : vector<128x128xf32>
    %28 = tpu.matmul %25, %27, %cst_20 {dimension_numbers = #tpu.dot_dimension_numbers<[1], [0], [0], [1], [0, 0, 1, 1], [], []>} : vector<128x128xf32>, vector<128x128xf32>, vector<128x128xf32> -> vector<128x128xf32>
    %c4 = arith.constant 4 : index
    %c0_21 = arith.constant 0 : index
    %c0_22 = arith.constant 0 : index
    %29 = vector.load %arg2[%c4, %c0_21, %c0_22] : memref<6x1x128xf32, #tpu.memory_space<vmem>>, vector<1x1x128xf32>
    %30 = vector.shape_cast %29 : vector<1x1x128xf32> to vector<1x128xf32>
    %31 = vector.broadcast %30 : vector<1x128xf32> to vector<128x128xf32>
    %32 = arith.addf %28, %31 : vector<128x128xf32>
    %33 = math.tanh %32 : vector<128x128xf32>
    %c3_23 = arith.constant 3 : index
    %c0_24 = arith.constant 0 : index
    %c0_25 = arith.constant 0 : index
    %34 = vector.load %arg3[%c3_23, %c0_24, %c0_25] : memref<4x128x128xf32, #tpu.memory_space<vmem>>, vector<1x128x128xf32>
    %35 = vector.shape_cast %34 : vector<1x128x128xf32> to vector<128x128xf32>
    %cst_26 = arith.constant dense<0.000000e+00> : vector<128x128xf32>
    %36 = tpu.matmul %33, %35, %cst_26 {dimension_numbers = #tpu.dot_dimension_numbers<[1], [0], [0], [1], [0, 0, 1, 1], [], []>} : vector<128x128xf32>, vector<128x128xf32>, vector<128x128xf32> -> vector<128x128xf32>
    %c5 = arith.constant 5 : index
    %c0_27 = arith.constant 0 : index
    %c0_28 = arith.constant 0 : index
    %37 = vector.load %arg2[%c5, %c0_27, %c0_28] : memref<6x1x128xf32, #tpu.memory_space<vmem>>, vector<1x1x128xf32>
    %38 = vector.shape_cast %37 : vector<1x1x128xf32> to vector<1x128xf32>
    %39 = vector.broadcast %38 : vector<1x128xf32> to vector<128x128xf32>
    %40 = arith.addf %36, %39 : vector<128x128xf32>
    %c0_29 = arith.constant 0 : index
    %c0_30 = arith.constant 0 : index
    %41 = vector.load %arg4[%c0_29, %c0_30] : memref<128x128xf32, #tpu.memory_space<vmem>>, vector<128x128xf32>
    tpu.vector_store %arg4[%c0_29, %c0_30], %40 {strides = array<i32>} : memref<128x128xf32, #tpu.memory_space<vmem>>, vector<128x128xf32>,
    return
  }
  func.func @transform_0(%arg0: i32) -> (i32, i32) {
    %c0_i32 = arith.constant 0 : i32
    %c0_i32_0 = arith.constant 0 : i32
    return %arg0, %c0_i32 : i32, i32
  }
  func.func @transform_1(%arg0: i32) -> (i32, i32, i32) {
    %c0_i32 = arith.constant 0 : i32
    %c0_i32_0 = arith.constant 0 : i32
    %c0_i32_1 = arith.constant 0 : i32
    %c0_i32_2 = arith.constant 0 : i32
    return %c0_i32, %c0_i32_0, %c0_i32_1 : i32, i32, i32
  }
  func.func @transform_2(%arg0: i32) -> (i32, i32, i32) {
    %c0_i32 = arith.constant 0 : i32
    %c0_i32_0 = arith.constant 0 : i32
    %c0_i32_1 = arith.constant 0 : i32
    %c0_i32_2 = arith.constant 0 : i32
    return %c0_i32, %c0_i32_0, %c0_i32_1 : i32, i32, i32
  }
  func.func @transform_3(%arg0: i32) -> (i32, i32) {
    %c0_i32 = arith.constant 0 : i32
    %c0_i32_0 = arith.constant 0 : i32
    return %arg0, %c0_i32 : i32, i32
  }
}

</mosaic_0001>

<llo_original>
// kernel: tpu_custom_call.1
$region0: #{tpu_custom_call.1}
  #allocation0 [shape = 'u32[]', space=smem, size = 0x4, offset = 0x4, fixed_abs, tag = 'smem constant byte address 0x4 - core index']
  #allocation1 [shape = 'u32[144,128]{1,0:T(1,128)}', space=vmem, size = 0x12000, scoped, tag = 'internal scratch']
  %s0 = inlined_call_operand.hbm [shape: f32[128,128], index: 0, kind: input, shape index: {}]
  %s1 = inlined_call_operand.hbm [shape: f32[6,1,128], index: 1, kind: input, shape index: {}]
  %s2 = inlined_call_operand.hbm [shape: f32[4,128,128], index: 2, kind: input, shape index: {}]
  %s3 = inlined_call_operand.hbm [shape: f32[128,128], index: 3, kind: output, shape index: {}]
  %s4 = sld [smem:[#allocation0]]
  $region34: #{tpu_custom_call.1} parent=0
    _
  %s6 = ssub.s32 1, %s4
  %s7 = scalar_select 0, %s6, %s4
  $region1: #{tpu_custom_call.1} parent=0
    #allocation2 [shape = 'u8[65536]{0}', space=vmem, size = 0x10000, scoped, tag = 'input window, operand 0, single buffered']
    #allocation3 [shape = 's32[1]{0}', space=sflag, size = 0x4, scoped, tag = 'scoped memory for tpu_custom_call.1']
    #allocation4 [shape = 's32[1]{0}', space=sflag, size = 0x4, scoped, tag = 'scoped memory for tpu_custom_call.1']
    #allocation5 [shape = 'u8[3072]{0}', space=vmem, size = 0xc00, scoped, tag = 'input window, operand 1, single buffered']
    #allocation6 [shape = 's32[1]{0}', space=sflag, size = 0x4, scoped, tag = 'scoped memory for tpu_custom_call.1']
    #allocation7 [shape = 'u8[262144]{0}', space=vmem, size = 0x40000, scoped, tag = 'input window, operand 2, single buffered']
    #allocation8 [shape = 'u8[65536]{0}', space=vmem, size = 0x10000, scoped, tag = 'output window, operand 0, single buffered']
    %8 = vsyncpa [#allocation3], 0
    %9 = vsyncpa [#allocation6], 0
    %10 = vsyncpa [#allocation4], 0
    // Predicated region
    $region2: #{tpu_custom_call.1} parent=1 // pred_check
      _
    $region3: #{tpu_custom_call.1} parent=1 // pred_check_branch
      %12 = sbr.rel (0) target = $region5
    $region4: #{tpu_custom_call.1} parent=1 // pred_region
      %s14 = ssub.s32 2048, 2048
      %15 = vsyncadd [#allocation3], %s14
      %s16 = sshll.u32 [#allocation2], 4
      %s17 = int_to_ptr.vmem [resolvable:$true] %s16
      %22 = dma.hbm_to_vmem [thread:$0]  %s0, 2048, %s17, [#allocation3], 128, 128, 8
    $region5: #{tpu_custom_call.1} parent=1 // pred_fallthru
      _
    // Predicated region
    $region6: #{tpu_custom_call.1} parent=1 // pred_check
      _
    $region7: #{tpu_custom_call.1} parent=1 // pred_check_branch
      %24 = sbr.rel (0) target = $region9
    $region8: #{tpu_custom_call.1} parent=1 // pred_region
      %s26 = ssub.s32 96, 96
      %27 = vsyncadd [#allocation6], %s26
      %s28 = sshll.u32 [#allocation5], 4
      %s29 = int_to_ptr.vmem [resolvable:$true] %s28
      %34 = dma.hbm_to_vmem [thread:$0]  %s1, 96, %s29, [#allocation6], 16, 16, 1
    $region9: #{tpu_custom_call.1} parent=1 // pred_fallthru
      _
    // Predicated region
    $region10: #{tpu_custom_call.1} parent=1 // pred_check
      _
    $region11: #{tpu_custom_call.1} parent=1 // pred_check_branch
      %36 = sbr.rel (0) target = $region13
    $region12: #{tpu_custom_call.1} parent=1 // pred_region
      %s38 = ssub.s32 8192, 8192
      %39 = vsyncadd [#allocation6], %s38
      %s40 = sshll.u32 [#allocation7], 4
      %s41 = int_to_ptr.vmem [resolvable:$true] %s40
      %46 = dma.hbm_to_vmem [thread:$0]  %s2, 8192, %s41, [#allocation6], 128, 128, 8
    $region13: #{tpu_custom_call.1} parent=1 // pred_fallthru
      _
    // Predicated region
    $region14: #{tpu_custom_call.1} parent=1 // pred_check
      _
    $region15: #{tpu_custom_call.1} parent=1 // pred_check_branch
      %48 = sbr.rel (0) target = $region17
    $region16: #{tpu_custom_call.1} parent=1 // pred_region
      %49 = dma.done [#allocation3], 2048
    $region17: #{tpu_custom_call.1} parent=1 // pred_fallthru
      _
    // Predicated region
    $region18: #{tpu_custom_call.1} parent=1 // pred_check
      _
    $region19: #{tpu_custom_call.1} parent=1 // pred_check_branch
      %51 = sbr.rel (0) target = $region21
    $region20: #{tpu_custom_call.1} parent=1 // pred_region
      %52 = dma.done [#allocation6], 96
    $region21: #{tpu_custom_call.1} parent=1 // pred_fallthru
      _
    // Predicated region
    $region22: #{tpu_custom_call.1} parent=1 // pred_check
      _
    $region23: #{tpu_custom_call.1} parent=1 // pred_check_branch
      %54 = sbr.rel (0) target = $region25
    $region24: #{tpu_custom_call.1} parent=1 // pred_region
      %55 = dma.done [#allocation6], 8192
    $region25: #{tpu_custom_call.1} parent=1 // pred_fallthru
      _
    %v56 = vld [vmem:[#allocation2] sm:$0xff]
    %v57 = vld [vmem:[#allocation2 + $0x8] sm:$0xff]
    %v58 = vld [vmem:[#allocation2 + $0x10] sm:$0xff]
    %v59 = vld [vmem:[#allocation2 + $0x18] sm:$0xff]
    %v60 = vld [vmem:[#allocation2 + $0x20] sm:$0xff]
    %v61 = vld [vmem:[#allocation2 + $0x28] sm:$0xff]
    %v62 = vld [vmem:[#allocation2 + $0x30] sm:$0xff]
    %v63 = vld [vmem:[#allocation2 + $0x38] sm:$0xff]
    %v64 = vld [vmem:[#allocation2 + $0x40] sm:$0xff]
    %v65 = vld [vmem:[#allocation2 + $0x48] sm:$0xff]
    %v66 = vld [vmem:[#allocation2 + $0x50] sm:$0xff]
    %v67 = vld [vmem:[#allocation2 + $0x58] sm:$0xff]
    %v68 = vld [vmem:[#allocation2 + $0x60] sm:$0xff]
    %v69 = vld [vmem:[#allocation2 + $0x68] sm:$0xff]
    %v70 = vld [vmem:[#allocation2 + $0x70] sm:$0xff]
    %v71 = vld [vmem:[#allocation2 + $0x78] sm:$0xff]
    %v72 = vld [vmem:[#allocation5] sm:$0x1]
    %v74 = vlaneseq
    %v75 = vshrl.u32 %v74, 7
    %v76 = vsub.s32 0, %v75
    %v77 = vrot.slane %v72, %v76
    %v79 = vmul.f32 %v56, %v77
    %v80 = vmul.f32 %v57, %v77
    %v81 = vmul.f32 %v58, %v77
    %v82 = vmul.f32 %v59, %v77
    %v83 = vmul.f32 %v60, %v77
    %v84 = vmul.f32 %v61, %v77
    %v85 = vmul.f32 %v62, %v77
    %v86 = vmul.f32 %v63, %v77
    %v87 = vmul.f32 %v64, %v77
    %v88 = vmul.f32 %v65, %v77
    %v89 = vmul.f32 %v66, %v77
    %v90 = vmul.f32 %v67, %v77
    %v91 = vmul.f32 %v68, %v77
    %v92 = vmul.f32 %v69, %v77
    %v93 = vmul.f32 %v70, %v77
    %v94 = vmul.f32 %v71, %v77
    %s95 = scalar_lea.vmem [#allocation5], 1
    %v96 = vld [vmem:[%s95] sm:$0x1]
    %v98 = vlaneseq
    %v99 = vshrl.u32 %v98, 7
    %v100 = vsub.s32 0, %v99
    %v101 = vrot.slane %v96, %v100
    %v103 = vadd.f32 %v79, %v101
    %v104 = vadd.f32 %v80, %v101
    %v105 = vadd.f32 %v81, %v101
    %v106 = vadd.f32 %v82, %v101
    %v107 = vadd.f32 %v83, %v101
    %v108 = vadd.f32 %v84, %v101
    %v109 = vadd.f32 %v85, %v101
    %v110 = vadd.f32 %v86, %v101
    %v111 = vadd.f32 %v87, %v101
    %v112 = vadd.f32 %v88, %v101
    %v113 = vadd.f32 %v89, %v101
    %v114 = vadd.f32 %v90, %v101
    %v115 = vadd.f32 %v91, %v101
    %v116 = vadd.f32 %v92, %v101
    %v117 = vadd.f32 %v93, %v101
    %v118 = vadd.f32 %v94, %v101
    %v119 = vtanh.pop %v103
    %v120 = vtanh.pop %v104
    %v121 = vtanh.pop %v105
    %v122 = vtanh.pop %v106
    %v123 = vtanh.pop %v107
    %v124 = vtanh.pop %v108
    %v125 = vtanh.pop %v109
    %v126 = vtanh.pop %v110
    %v127 = vtanh.pop %v111
    %v128 = vtanh.pop %v112
    %v129 = vtanh.pop %v113
    %v130 = vtanh.pop %v114
    %v131 = vtanh.pop %v115
    %v132 = vtanh.pop %v116
    %v133 = vtanh.pop %v117
    %v134 = vtanh.pop %v118
    %v135 = vld [vmem:[#allocation7] sm:$0xff]
    %v136 = vld [vmem:[#allocation7 + $0x8] sm:$0xff]
    %v137 = vld [vmem:[#allocation7 + $0x10] sm:$0xff]
    %v138 = vld [vmem:[#allocation7 + $0x18] sm:$0xff]
    %v139 = vld [vmem:[#allocation7 + $0x20] sm:$0xff]
    %v140 = vld [vmem:[#allocation7 + $0x28] sm:$0xff]
    %v141 = vld [vmem:[#allocation7 + $0x30] sm:$0xff]
    %v142 = vld [vmem:[#allocation7 + $0x38] sm:$0xff]
    %v143 = vld [vmem:[#allocation7 + $0x40] sm:$0xff]
    %v144 = vld [vmem:[#allocation7 + $0x48] sm:$0xff]
    %v145 = vld [vmem:[#allocation7 + $0x50] sm:$0xff]
    %v146 = vld [vmem:[#allocation7 + $0x58] sm:$0xff]
    %v147 = vld [vmem:[#allocation7 + $0x60] sm:$0xff]
    %v148 = vld [vmem:[#allocation7 + $0x68] sm:$0xff]
    %v149 = vld [vmem:[#allocation7 + $0x70] sm:$0xff]
    %v150 = vld [vmem:[#allocation7 + $0x78] sm:$0xff]
    %s151 = scalar_lea.vmem [#allocation5], 2
    %v152 = vld [vmem:[%s151] sm:$0x1]
    %v154 = vlaneseq
    %v155 = vshrl.u32 %v154, 7
    %v156 = vsub.s32 0, %v155
    %v157 = vrot.slane %v152, %v156
    %159 = vmatprep.subr.mxu0 0.0
    %160 = vmatpush1.msra.mxu0 %v150
    %161 = vmatprep.subr.mxu0 0.0
    %162 = vmatpush1.msra.mxu0 %v149
    %163 = vmatprep.subr.mxu0 0.0
    %164 = vmatpush1.msra.mxu0 %v148
    %165 = vmatprep.subr.mxu0 0.0
    %166 = vmatpush1.msra.mxu0 %v147
    %167 = vmatprep.subr.mxu0 0.0
    %168 = vmatpush1.msra.mxu0 %v146
    %169 = vmatprep.subr.mxu0 0.0
    %170 = vmatpush1.msra.mxu0 %v145
    %171 = vmatprep.subr.mxu0 0.0
    %172 = vmatpush1.msra.mxu0 %v144
    %173 = vmatprep.subr.mxu0 0.0
    %174 = vmatpush1.msra.mxu0 %v143
    %175 = vmatprep.subr.mxu0 0.0
    %176 = vmatpush1.msra.mxu0 %v142
    %177 = vmatprep.subr.mxu0 0.0
    %178 = vmatpush1.msra.mxu0 %v141
    %179 = vmatprep.subr.mxu0 0.0
    %180 = vmatpush1.msra.mxu0 %v140
    %181 = vmatprep.subr.mxu0 0.0
    %182 = vmatpush1.msra.mxu0 %v139
    %183 = vmatprep.subr.mxu0 0.0
    %184 = vmatpush1.msra.mxu0 %v138
    %185 = vmatprep.subr.mxu0 0.0
    %186 = vmatpush1.msra.mxu0 %v137
    %187 = vmatprep.subr.mxu0 0.0
    %188 = vmatpush1.msra.mxu0 %v136
    %189 = vmatprep.subr.mxu0 0.0
    %190 = vmatpush1.msra.mxu0 %v135
    %191 = vmatprep.subr.mxu0 0.0
    %192 = vmatpush2.msra.mxu0 0.0
    %193 = vmatprep.subr.mxu0 0.0
    %194 = vmatpush2.msra.mxu0 0.0
    %195 = vmatprep.subr.mxu0 0.0
    %196 = vmatpush2.msra.mxu0 0.0
    %197 = vmatprep.subr.mxu0 0.0
    %198 = vmatpush2.msra.mxu0 0.0
    %199 = vmatprep.subr.mxu0 0.0
    %200 = vmatpush2.msra.mxu0 0.0
    %201 = vmatprep.subr.mxu0 0.0
    %202 = vmatpush2.msra.mxu0 0.0
    %203 = vmatprep.subr.mxu0 0.0
    %204 = vmatpush2.msra.mxu0 0.0
    %205 = vmatprep.subr.mxu0 0.0
    %206 = vmatpush2.msra.mxu0 0.0
    %207 = vmatprep.subr.mxu0 0.0
    %208 = vmatpush2.msra.mxu0 0.0
    %209 = vmatprep.subr.mxu0 0.0
    %210 = vmatpush2.msra.mxu0 0.0
    %211 = vmatprep.subr.mxu0 0.0
    %212 = vmatpush2.msra.mxu0 0.0
    %213 = vmatprep.subr.mxu0 0.0
    %214 = vmatpush2.msra.mxu0 0.0
    %215 = vmatprep.subr.mxu0 0.0
    %216 = vmatpush2.msra.mxu0 0.0
    %217 = vmatprep.subr.mxu0 0.0
    %218 = vmatpush2.msra.mxu0 0.0
    %219 = vmatprep.subr.mxu0 0.0
    %220 = vmatpush2.msra.mxu0 0.0
    %221 = vmatprep.subr.mxu0 0.0
    %222 = vmatpush2.msra.mxu0 0.0
    %223 = vmatprep.mubr.f32.mxu0 0.0
    %224 = vmatmul.mubr.f32.gmra.mxu0 %v119
    %v225 = vpop.f32.mrf.mxu0
    %v226 = vadd.f32 %v157, %v225
    %v227 = vpop.f32.mrf.mxu0
    %228 = vmatprep.mubr.f32.mxu0 0.0
    %229 = vmatmul.mubr.f32.gmra.mxu0 %v120
    %v230 = vpop.f32.mrf.mxu0
    %v231 = vadd.f32 %v157, %v230
    %v232 = vpop.f32.mrf.mxu0
    %233 = vmatprep.mubr.f32.mxu0 0.0
    %234 = vmatmul.mubr.f32.gmra.mxu0 %v121
    %v235 = vpop.f32.mrf.mxu0
    %v236 = vadd.f32 %v157, %v235
    %v237 = vpop.f32.mrf.mxu0
    %238 = vmatprep.mubr.f32.mxu0 0.0
    %239 = vmatmul.mubr.f32.gmra.mxu0 %v122
    %v240 = vpop.f32.mrf.mxu0
    %v241 = vadd.f32 %v157, %v240
    %v242 = vpop.f32.mrf.mxu0
    %243 = vmatprep.mubr.f32.mxu0 0.0
    %244 = vmatmul.mubr.f32.gmra.mxu0 %v123
    %v245 = vpop.f32.mrf.mxu0
    %v246 = vadd.f32 %v157, %v245
    %v247 = vpop.f32.mrf.mxu0
    %248 = vmatprep.mubr.f32.mxu0 0.0
    %249 = vmatmul.mubr.f32.gmra.mxu0 %v124
    %v250 = vpop.f32.mrf.mxu0
    %v251 = vadd.f32 %v157, %v250
    %v252 = vpop.f32.mrf.mxu0
    %253 = vmatprep.mubr.f32.mxu0 0.0
    %254 = vmatmul.mubr.f32.gmra.mxu0 %v125
    %v255 = vpop.f32.mrf.mxu0
    %v256 = vadd.f32 %v157, %v255
    %v257 = vpop.f32.mrf.mxu0
    %258 = vmatprep.mubr.f32.mxu0 0.0
    %259 = vmatmul.mubr.f32.gmra.mxu0 %v126
    %v260 = vpop.f32.mrf.mxu0
    %v261 = vadd.f32 %v157, %v260
    %v262 = vpop.f32.mrf.mxu0
    %263 = vmatprep.mubr.f32.mxu0 0.0
    %264 = vmatmul.mubr.f32.gmra.mxu0 %v127
    %v265 = vpop.f32.mrf.mxu0
    %v266 = vadd.f32 %v157, %v265
    %v267 = vpop.f32.mrf.mxu0
    %268 = vmatprep.mubr.f32.mxu0 0.0
    %269 = vmatmul.mubr.f32.gmra.mxu0 %v128
    %v270 = vpop.f32.mrf.mxu0
    %v271 = vadd.f32 %v157, %v270
    %v272 = vpop.f32.mrf.mxu0
    %273 = vmatprep.mubr.f32.mxu0 0.0
    %274 = vmatmul.mubr.f32.gmra.mxu0 %v129
    %v275 = vpop.f32.mrf.mxu0
    %v276 = vadd.f32 %v157, %v275
    %v277 = vpop.f32.mrf.mxu0
    %278 = vmatprep.mubr.f32.mxu0 0.0
    %279 = vmatmul.mubr.f32.gmra.mxu0 %v130
    %v280 = vpop.f32.mrf.mxu0
    %v281 = vadd.f32 %v157, %v280
    %v282 = vpop.f32.mrf.mxu0
    %283 = vmatprep.mubr.f32.mxu0 0.0
    %284 = vmatmul.mubr.f32.gmra.mxu0 %v131
    %v285 = vpop.f32.mrf.mxu0
    %v286 = vadd.f32 %v157, %v285
    %v287 = vpop.f32.mrf.mxu0
    %288 = vmatprep.mubr.f32.mxu0 0.0
    %289 = vmatmul.mubr.f32.gmra.mxu0 %v132
    %v290 = vpop.f32.mrf.mxu0
    %v291 = vadd.f32 %v157, %v290
    %v292 = vpop.f32.mrf.mxu0
    %293 = vmatprep.mubr.f32.mxu0 0.0
    %294 = vmatmul.mubr.f32.gmra.mxu0 %v133
    %v295 = vpop.f32.mrf.mxu0
    %v296 = vadd.f32 %v157, %v295
    %v297 = vpop.f32.mrf.mxu0
    %298 = vmatprep.mubr.f32.mxu0 0.0
    %299 = vmatmul.mubr.f32.gmra.mxu0 %v134
    %v300 = vpop.f32.mrf.mxu0
    %v301 = vadd.f32 %v157, %v300
    %v302 = vpop.f32.mrf.mxu0
    %303 = vdwg.mxu0
    %v304 = vtanh.pop %v226
    %v305 = vtanh.pop %v231
    %v306 = vtanh.pop %v236
    %v307 = vtanh.pop %v241
    %v308 = vtanh.pop %v246
    %v309 = vtanh.pop %v251
    %v310 = vtanh.pop %v256
    %v311 = vtanh.pop %v261
    %v312 = vtanh.pop %v266
    %v313 = vtanh.pop %v271
    %v314 = vtanh.pop %v276
    %v315 = vtanh.pop %v281
    %v316 = vtanh.pop %v286
    %v317 = vtanh.pop %v291
    %v318 = vtanh.pop %v296
    %v319 = vtanh.pop %v301
    %s320 = scalar_lea.vmem [#allocation7], 128
    %v321 = vld [vmem:[%s320] sm:$0xff]
    %v322 = vld [vmem:[%s320 + $0x8] sm:$0xff]
    %v323 = vld [vmem:[%s320 + $0x10] sm:$0xff]
    %v324 = vld [vmem:[%s320 + $0x18] sm:$0xff]
    %v325 = vld [vmem:[%s320 + $0x20] sm:$0xff]
    %v326 = vld [vmem:[%s320 + $0x28] sm:$0xff]
    %v327 = vld [vmem:[%s320 + $0x30] sm:$0xff]
    %v328 = vld [vmem:[%s320 + $0x38] sm:$0xff]
    %v329 = vld [vmem:[%s320 + $0x40] sm:$0xff]
    %v330 = vld [vmem:[%s320 + $0x48] sm:$0xff]
    %v331 = vld [vmem:[%s320 + $0x50] sm:$0xff]
    %v332 = vld [vmem:[%s320 + $0x58] sm:$0xff]
    %v333 = vld [vmem:[%s320 + $0x60] sm:$0xff]
    %v334 = vld [vmem:[%s320 + $0x68] sm:$0xff]
    %v335 = vld [vmem:[%s320 + $0x70] sm:$0xff]
    %v336 = vld [vmem:[%s320 + $0x78] sm:$0xff]
    %s337 = scalar_lea.vmem [#allocation5], 3
    %v338 = vld [vmem:[%s337] sm:$0x1]
    %v340 = vlaneseq
    %v341 = vshrl.u32 %v340, 7
    %v342 = vsub.s32 0, %v341
    %v343 = vrot.slane %v338, %v342
    %345 = vmatprep.subr.mxu0 0.0
    %346 = vmatpush1.msra.mxu0 %v336
    %347 = vmatprep.subr.mxu0 0.0
    %348 = vmatpush1.msra.mxu0 %v335
    %349 = vmatprep.subr.mxu0 0.0
    %350 = vmatpush1.msra.mxu0 %v334
    %351 = vmatprep.subr.mxu0 0.0
    %352 = vmatpush1.msra.mxu0 %v333
    %353 = vmatprep.subr.mxu0 0.0
    %354 = vmatpush1.msra.mxu0 %v332
    %355 = vmatprep.subr.mxu0 0.0
    %356 = vmatpush1.msra.mxu0 %v331
    %357 = vmatprep.subr.mxu0 0.0
    %358 = vmatpush1.msra.mxu0 %v330
    %359 = vmatprep.subr.mxu0 0.0
    %360 = vmatpush1.msra.mxu0 %v329
    %361 = vmatprep.subr.mxu0 0.0
    %362 = vmatpush1.msra.mxu0 %v328
    %363 = vmatprep.subr.mxu0 0.0
    %364 = vmatpush1.msra.mxu0 %v327
    %365 = vmatprep.subr.mxu0 0.0
    %366 = vmatpush1.msra.mxu0 %v326
    %367 = vmatprep.subr.mxu0 0.0
    %368 = vmatpush1.msra.mxu0 %v325
    %369 = vmatprep.subr.mxu0 0.0
    %370 = vmatpush1.msra.mxu0 %v324
    %371 = vmatprep.subr.mxu0 0.0
    %372 = vmatpush1.msra.mxu0 %v323
    %373 = vmatprep.subr.mxu0 0.0
    %374 = vmatpush1.msra.mxu0 %v322
    %375 = vmatprep.subr.mxu0 0.0
    %376 = vmatpush1.msra.mxu0 %v321
    %377 = vmatprep.subr.mxu0 0.0
    %378 = vmatpush2.msra.mxu0 0.0
    %379 = vmatprep.subr.mxu0 0.0
    %380 = vmatpush2.msra.mxu0 0.0
    %381 = vmatprep.subr.mxu0 0.0
    %382 = vmatpush2.msra.mxu0 0.0
    %383 = vmatprep.subr.mxu0 0.0
    %384 = vmatpush2.msra.mxu0 0.0
    %385 = vmatprep.subr.mxu0 0.0
    %386 = vmatpush2.msra.mxu0 0.0
    %387 = vmatprep.subr.mxu0 0.0
    %388 = vmatpush2.msra.mxu0 0.0
    %389 = vmatprep.subr.mxu0 0.0
    %390 = vmatpush2.msra.mxu0 0.0
    %391 = vmatprep.subr.mxu0 0.0
    %392 = vmatpush2.msra.mxu0 0.0
    %393 = vmatprep.subr.mxu0 0.0
    %394 = vmatpush2.msra.mxu0 0.0
    %395 = vmatprep.subr.mxu0 0.0
    %396 = vmatpush2.msra.mxu0 0.0
    %397 = vmatprep.subr.mxu0 0.0
    %398 = vmatpush2.msra.mxu0 0.0
    %399 = vmatprep.subr.mxu0 0.0
    %400 = vmatpush2.msra.mxu0 0.0
    %401 = vmatprep.subr.mxu0 0.0
    %402 = vmatpush2.msra.mxu0 0.0
    %403 = vmatprep.subr.mxu0 0.0
    %404 = vmatpush2.msra.mxu0 0.0
    %405 = vmatprep.subr.mxu0 0.0
    %406 = vmatpush2.msra.mxu0 0.0
    %407 = vmatprep.subr.mxu0 0.0
    %408 = vmatpush2.msra.mxu0 0.0
    %409 = vmatprep.mubr.f32.mxu0 0.0
    %410 = vmatmul.mubr.f32.gmra.mxu0 %v304
    %v411 = vpop.f32.mrf.mxu0
    %v412 = vadd.f32 %v343, %v411
    %v413 = vpop.f32.mrf.mxu0
    %414 = vmatprep.mubr.f32.mxu0 0.0
    %415 = vmatmul.mubr.f32.gmra.mxu0 %v305
    %v416 = vpop.f32.mrf.mxu0
    %v417 = vadd.f32 %v343, %v416
    %v418 = vpop.f32.mrf.mxu0
    %419 = vmatprep.mubr.f32.mxu0 0.0
    %420 = vmatmul.mubr.f32.gmra.mxu0 %v306
    %v421 = vpop.f32.mrf.mxu0
    %v422 = vadd.f32 %v343, %v421
    %v423 = vpop.f32.mrf.mxu0
    %424 = vmatprep.mubr.f32.mxu0 0.0
    %425 = vmatmul.mubr.f32.gmra.mxu0 %v307
    %v426 = vpop.f32.mrf.mxu0
    %v427 = vadd.f32 %v343, %v426
    %v428 = vpop.f32.mrf.mxu0
    %429 = vmatprep.mubr.f32.mxu0 0.0
    %430 = vmatmul.mubr.f32.gmra.mxu0 %v308
    %v431 = vpop.f32.mrf.mxu0
    %v432 = vadd.f32 %v343, %v431
    %v433 = vpop.f32.mrf.mxu0
    %434 = vmatprep.mubr.f32.mxu0 0.0
    %435 = vmatmul.mubr.f32.gmra.mxu0 %v309
    %v436 = vpop.f32.mrf.mxu0
    %v437 = vadd.f32 %v343, %v436
    %v438 = vpop.f32.mrf.mxu0
    %439 = vmatprep.mubr.f32.mxu0 0.0
    %440 = vmatmul.mubr.f32.gmra.mxu0 %v310
    %v441 = vpop.f32.mrf.mxu0
    %v442 = vadd.f32 %v343, %v441
    %v443 = vpop.f32.mrf.mxu0
    %444 = vmatprep.mubr.f32.mxu0 0.0
    %445 = vmatmul.mubr.f32.gmra.mxu0 %v311
    %v446 = vpop.f32.mrf.mxu0
    %v447 = vadd.f32 %v343, %v446
    %v448 = vpop.f32.mrf.mxu0
    %449 = vmatprep.mubr.f32.mxu0 0.0
    %450 = vmatmul.mubr.f32.gmra.mxu0 %v312
    %v451 = vpop.f32.mrf.mxu0
    %v452 = vadd.f32 %v343, %v451
    %v453 = vpop.f32.mrf.mxu0
    %454 = vmatprep.mubr.f32.mxu0 0.0
    %455 = vmatmul.mubr.f32.gmra.mxu0 %v313
    %v456 = vpop.f32.mrf.mxu0
    %v457 = vadd.f32 %v343, %v456
    %v458 = vpop.f32.mrf.mxu0
    %459 = vmatprep.mubr.f32.mxu0 0.0
    %460 = vmatmul.mubr.f32.gmra.mxu0 %v314
    %v461 = vpop.f32.mrf.mxu0
    %v462 = vadd.f32 %v343, %v461
    %v463 = vpop.f32.mrf.mxu0
    %464 = vmatprep.mubr.f32.mxu0 0.0
    %465 = vmatmul.mubr.f32.gmra.mxu0 %v315
    %v466 = vpop.f32.mrf.mxu0
    %v467 = vadd.f32 %v343, %v466
    %v468 = vpop.f32.mrf.mxu0
    %469 = vmatprep.mubr.f32.mxu0 0.0
    %470 = vmatmul.mubr.f32.gmra.mxu0 %v316
    %v471 = vpop.f32.mrf.mxu0
    %v472 = vadd.f32 %v343, %v471
    %v473 = vpop.f32.mrf.mxu0
    %474 = vmatprep.mubr.f32.mxu0 0.0
    %475 = vmatmul.mubr.f32.gmra.mxu0 %v317
    %v476 = vpop.f32.mrf.mxu0
    %v477 = vadd.f32 %v343, %v476
    %v478 = vpop.f32.mrf.mxu0
    %479 = vmatprep.mubr.f32.mxu0 0.0
    %480 = vmatmul.mubr.f32.gmra.mxu0 %v318
    %v481 = vpop.f32.mrf.mxu0
    %v482 = vadd.f32 %v343, %v481
    %v483 = vpop.f32.mrf.mxu0
    %484 = vmatprep.mubr.f32.mxu0 0.0
    %485 = vmatmul.mubr.f32.gmra.mxu0 %v319
    %v486 = vpop.f32.mrf.mxu0
    %v487 = vadd.f32 %v343, %v486
    %v488 = vpop.f32.mrf.mxu0
    %489 = vdwg.mxu0
    %v490 = vtanh.pop %v412
    %v491 = vtanh.pop %v417
    %v492 = vtanh.pop %v422
    %v493 = vtanh.pop %v427
    %v494 = vtanh.pop %v432
    %v495 = vtanh.pop %v437
    %v496 = vtanh.pop %v442
    %v497 = vtanh.pop %v447
    %v498 = vtanh.pop %v452
    %v499 = vtanh.pop %v457
    %v500 = vtanh.pop %v462
    %v501 = vtanh.pop %v467
    %v502 = vtanh.pop %v472
    %v503 = vtanh.pop %v477
    %v504 = vtanh.pop %v482
    %v505 = vtanh.pop %v487
    %s506 = scalar_lea.vmem [#allocation7], 256
    %v507 = vld [vmem:[%s506] sm:$0xff]
    %v508 = vld [vmem:[%s506 + $0x8] sm:$0xff]
    %v509 = vld [vmem:[%s506 + $0x10] sm:$0xff]
    %v510 = vld [vmem:[%s506 + $0x18] sm:$0xff]
    %v511 = vld [vmem:[%s506 + $0x20] sm:$0xff]
    %v512 = vld [vmem:[%s506 + $0x28] sm:$0xff]
    %v513 = vld [vmem:[%s506 + $0x30] sm:$0xff]
    %v514 = vld [vmem:[%s506 + $0x38] sm:$0xff]
    %v515 = vld [vmem:[%s506 + $0x40] sm:$0xff]
    %v516 = vld [vmem:[%s506 + $0x48] sm:$0xff]
    %v517 = vld [vmem:[%s506 + $0x50] sm:$0xff]
    %v518 = vld [vmem:[%s506 + $0x58] sm:$0xff]
    %v519 = vld [vmem:[%s506 + $0x60] sm:$0xff]
    %v520 = vld [vmem:[%s506 + $0x68] sm:$0xff]
    %v521 = vld [vmem:[%s506 + $0x70] sm:$0xff]
    %v522 = vld [vmem:[%s506 + $0x78] sm:$0xff]
    %s523 = scalar_lea.vmem [#allocation5], 4
    %v524 = vld [vmem:[%s523] sm:$0x1]
    %v526 = vlaneseq
    %v527 = vshrl.u32 %v526, 7
    %v528 = vsub.s32 0, %v527
    %v529 = vrot.slane %v524, %v528
    %531 = vmatprep.subr.mxu0 0.0
    %532 = vmatpush1.msra.mxu0 %v522
    %533 = vmatprep.subr.mxu0 0.0
    %534 = vmatpush1.msra.mxu0 %v521
    %535 = vmatprep.subr.mxu0 0.0
    %536 = vmatpush1.msra.mxu0 %v520
    %537 = vmatprep.subr.mxu0 0.0
    %538 = vmatpush1.msra.mxu0 %v519
    %539 = vmatprep.subr.mxu0 0.0
    %540 = vmatpush1.msra.mxu0 %v518
    %541 = vmatprep.subr.mxu0 0.0
    %542 = vmatpush1.msra.mxu0 %v517
    %543 = vmatprep.subr.mxu0 0.0
    %544 = vmatpush1.msra.mxu0 %v516
    %545 = vmatprep.subr.mxu0 0.0
    %546 = vmatpush1.msra.mxu0 %v515
    %547 = vmatprep.subr.mxu0 0.0
    %548 = vmatpush1.msra.mxu0 %v514
    %549 = vmatprep.subr.mxu0 0.0
    %550 = vmatpush1.msra.mxu0 %v513
    %551 = vmatprep.subr.mxu0 0.0
    %552 = vmatpush1.msra.mxu0 %v512
    %553 = vmatprep.subr.mxu0 0.0
    %554 = vmatpush1.msra.mxu0 %v511
    %555 = vmatprep.subr.mxu0 0.0
    %556 = vmatpush1.msra.mxu0 %v510
    %557 = vmatprep.subr.mxu0 0.0
    %558 = vmatpush1.msra.mxu0 %v509
    %559 = vmatprep.subr.mxu0 0.0
    %560 = vmatpush1.msra.mxu0 %v508
    %561 = vmatprep.subr.mxu0 0.0
    %562 = vmatpush1.msra.mxu0 %v507
    %563 = vmatprep.subr.mxu0 0.0
    %564 = vmatpush2.msra.mxu0 0.0
    %565 = vmatprep.subr.mxu0 0.0
    %566 = vmatpush2.msra.mxu0 0.0
    %567 = vmatprep.subr.mxu0 0.0
    %568 = vmatpush2.msra.mxu0 0.0
    %569 = vmatprep.subr.mxu0 0.0
    %570 = vmatpush2.msra.mxu0 0.0
    %571 = vmatprep.subr.mxu0 0.0
    %572 = vmatpush2.msra.mxu0 0.0
    %573 = vmatprep.subr.mxu0 0.0
    %574 = vmatpush2.msra.mxu0 0.0
    %575 = vmatprep.subr.mxu0 0.0
    %576 = vmatpush2.msra.mxu0 0.0
    %577 = vmatprep.subr.mxu0 0.0
    %578 = vmatpush2.msra.mxu0 0.0
    %579 = vmatprep.subr.mxu0 0.0
    %580 = vmatpush2.msra.mxu0 0.0
    %581 = vmatprep.subr.mxu0 0.0
    %582 = vmatpush2.msra.mxu0 0.0
    %583 = vmatprep.subr.mxu0 0.0
    %584 = vmatpush2.msra.mxu0 0.0
    %585 = vmatprep.subr.mxu0 0.0
    %586 = vmatpush2.msra.mxu0 0.0
    %587 = vmatprep.subr.mxu0 0.0
    %588 = vmatpush2.msra.mxu0 0.0
    %589 = vmatprep.subr.mxu0 0.0
    %590 = vmatpush2.msra.mxu0 0.0
    %591 = vmatprep.subr.mxu0 0.0
    %592 = vmatpush2.msra.mxu0 0.0
    %593 = vmatprep.subr.mxu0 0.0
    %594 = vmatpush2.msra.mxu0 0.0
    %595 = vmatprep.mubr.f32.mxu0 0.0
    %596 = vmatmul.mubr.f32.gmra.mxu0 %v490
    %v597 = vpop.f32.mrf.mxu0
    %v598 = vadd.f32 %v529, %v597
    %v599 = vpop.f32.mrf.mxu0
    %600 = vmatprep.mubr.f32.mxu0 0.0
    %601 = vmatmul.mubr.f32.gmra.mxu0 %v491
    %v602 = vpop.f32.mrf.mxu0
    %v603 = vadd.f32 %v529, %v602
    %v604 = vpop.f32.mrf.mxu0
    %605 = vmatprep.mubr.f32.mxu0 0.0
    %606 = vmatmul.mubr.f32.gmra.mxu0 %v492
    %v607 = vpop.f32.mrf.mxu0
    %v608 = vadd.f32 %v529, %v607
    %v609 = vpop.f32.mrf.mxu0
    %610 = vmatprep.mubr.f32.mxu0 0.0
    %611 = vmatmul.mubr.f32.gmra.mxu0 %v493
    %v612 = vpop.f32.mrf.mxu0
    %v613 = vadd.f32 %v529, %v612
    %v614 = vpop.f32.mrf.mxu0
    %615 = vmatprep.mubr.f32.mxu0 0.0
    %616 = vmatmul.mubr.f32.gmra.mxu0 %v494
    %v617 = vpop.f32.mrf.mxu0
    %v618 = vadd.f32 %v529, %v617
    %v619 = vpop.f32.mrf.mxu0
    %620 = vmatprep.mubr.f32.mxu0 0.0
    %621 = vmatmul.mubr.f32.gmra.mxu0 %v495
    %v622 = vpop.f32.mrf.mxu0
    %v623 = vadd.f32 %v529, %v622
    %v624 = vpop.f32.mrf.mxu0
    %625 = vmatprep.mubr.f32.mxu0 0.0
    %626 = vmatmul.mubr.f32.gmra.mxu0 %v496
    %v627 = vpop.f32.mrf.mxu0
    %v628 = vadd.f32 %v529, %v627
    %v629 = vpop.f32.mrf.mxu0
    %630 = vmatprep.mubr.f32.mxu0 0.0
    %631 = vmatmul.mubr.f32.gmra.mxu0 %v497
    %v632 = vpop.f32.mrf.mxu0
    %v633 = vadd.f32 %v529, %v632
    %v634 = vpop.f32.mrf.mxu0
    %635 = vmatprep.mubr.f32.mxu0 0.0
    %636 = vmatmul.mubr.f32.gmra.mxu0 %v498
    %v637 = vpop.f32.mrf.mxu0
    %v638 = vadd.f32 %v529, %v637
    %v639 = vpop.f32.mrf.mxu0
    %640 = vmatprep.mubr.f32.mxu0 0.0
    %641 = vmatmul.mubr.f32.gmra.mxu0 %v499
    %v642 = vpop.f32.mrf.mxu0
    %v643 = vadd.f32 %v529, %v642
    %v644 = vpop.f32.mrf.mxu0
    %645 = vmatprep.mubr.f32.mxu0 0.0
    %646 = vmatmul.mubr.f32.gmra.mxu0 %v500
    %v647 = vpop.f32.mrf.mxu0
    %v648 = vadd.f32 %v529, %v647
    %v649 = vpop.f32.mrf.mxu0
    %650 = vmatprep.mubr.f32.mxu0 0.0
    %651 = vmatmul.mubr.f32.gmra.mxu0 %v501
    %v652 = vpop.f32.mrf.mxu0
    %v653 = vadd.f32 %v529, %v652
    %v654 = vpop.f32.mrf.mxu0
    %655 = vmatprep.mubr.f32.mxu0 0.0
    %656 = vmatmul.mubr.f32.gmra.mxu0 %v502
    %v657 = vpop.f32.mrf.mxu0
    %v658 = vadd.f32 %v529, %v657
    %v659 = vpop.f32.mrf.mxu0
    %660 = vmatprep.mubr.f32.mxu0 0.0
    %661 = vmatmul.mubr.f32.gmra.mxu0 %v503
    %v662 = vpop.f32.mrf.mxu0
    %v663 = vadd.f32 %v529, %v662
    %v664 = vpop.f32.mrf.mxu0
    %665 = vmatprep.mubr.f32.mxu0 0.0
    %666 = vmatmul.mubr.f32.gmra.mxu0 %v504
    %v667 = vpop.f32.mrf.mxu0
    %v668 = vadd.f32 %v529, %v667
    %v669 = vpop.f32.mrf.mxu0
    %670 = vmatprep.mubr.f32.mxu0 0.0
    %671 = vmatmul.mubr.f32.gmra.mxu0 %v505
    %v672 = vpop.f32.mrf.mxu0
    %v673 = vadd.f32 %v529, %v672
    %v674 = vpop.f32.mrf.mxu0
    %675 = vdwg.mxu0
    %v676 = vtanh.pop %v598
    %v677 = vtanh.pop %v603
    %v678 = vtanh.pop %v608
    %v679 = vtanh.pop %v613
    %v680 = vtanh.pop %v618
    %v681 = vtanh.pop %v623
    %v682 = vtanh.pop %v628
    %v683 = vtanh.pop %v633
    %v684 = vtanh.pop %v638
    %v685 = vtanh.pop %v643
    %v686 = vtanh.pop %v648
    %v687 = vtanh.pop %v653
    %v688 = vtanh.pop %v658
    %v689 = vtanh.pop %v663
    %v690 = vtanh.pop %v668
    %v691 = vtanh.pop %v673
    %s692 = scalar_lea.vmem [#allocation7], 384
    %v693 = vld [vmem:[%s692] sm:$0xff]
    %v694 = vld [vmem:[%s692 + $0x8] sm:$0xff]
    %v695 = vld [vmem:[%s692 + $0x10] sm:$0xff]
    %v696 = vld [vmem:[%s692 + $0x18] sm:$0xff]
    %v697 = vld [vmem:[%s692 + $0x20] sm:$0xff]
    %v698 = vld [vmem:[%s692 + $0x28] sm:$0xff]
    %v699 = vld [vmem:[%s692 + $0x30] sm:$0xff]
    %v700 = vld [vmem:[%s692 + $0x38] sm:$0xff]
    %v701 = vld [vmem:[%s692 + $0x40] sm:$0xff]
    %v702 = vld [vmem:[%s692 + $0x48] sm:$0xff]
    %v703 = vld [vmem:[%s692 + $0x50] sm:$0xff]
    %v704 = vld [vmem:[%s692 + $0x58] sm:$0xff]
    %v705 = vld [vmem:[%s692 + $0x60] sm:$0xff]
    %v706 = vld [vmem:[%s692 + $0x68] sm:$0xff]
    %v707 = vld [vmem:[%s692 + $0x70] sm:$0xff]
    %v708 = vld [vmem:[%s692 + $0x78] sm:$0xff]
    %s709 = scalar_lea.vmem [#allocation5], 5
    %v710 = vld [vmem:[%s709] sm:$0x1]
    %v712 = vlaneseq
    %v713 = vshrl.u32 %v712, 7
    %v714 = vsub.s32 0, %v713
    %v715 = vrot.slane %v710, %v714
    %717 = vmatprep.subr.mxu0 0.0
    %718 = vmatpush1.msra.mxu0 %v708
    %719 = vmatprep.subr.mxu0 0.0
    %720 = vmatpush1.msra.mxu0 %v707
    %721 = vmatprep.subr.mxu0 0.0
    %722 = vmatpush1.msra.mxu0 %v706
    %723 = vmatprep.subr.mxu0 0.0
    %724 = vmatpush1.msra.mxu0 %v705
    %725 = vmatprep.subr.mxu0 0.0
    %726 = vmatpush1.msra.mxu0 %v704
    %727 = vmatprep.subr.mxu0 0.0
    %728 = vmatpush1.msra.mxu0 %v703
    %729 = vmatprep.subr.mxu0 0.0
    %730 = vmatpush1.msra.mxu0 %v702
    %731 = vmatprep.subr.mxu0 0.0
    %732 = vmatpush1.msra.mxu0 %v701
    %733 = vmatprep.subr.mxu0 0.0
    %734 = vmatpush1.msra.mxu0 %v700
    %735 = vmatprep.subr.mxu0 0.0
    %736 = vmatpush1.msra.mxu0 %v699
    %737 = vmatprep.subr.mxu0 0.0
    %738 = vmatpush1.msra.mxu0 %v698
    %739 = vmatprep.subr.mxu0 0.0
    %740 = vmatpush1.msra.mxu0 %v697
    %741 = vmatprep.subr.mxu0 0.0
    %742 = vmatpush1.msra.mxu0 %v696
    %743 = vmatprep.subr.mxu0 0.0
    %744 = vmatpush1.msra.mxu0 %v695
    %745 = vmatprep.subr.mxu0 0.0
    %746 = vmatpush1.msra.mxu0 %v694
    %747 = vmatprep.subr.mxu0 0.0
    %748 = vmatpush1.msra.mxu0 %v693
    %749 = vmatprep.subr.mxu0 0.0
    %750 = vmatpush2.msra.mxu0 0.0
    %751 = vmatprep.subr.mxu0 0.0
    %752 = vmatpush2.msra.mxu0 0.0
    %753 = vmatprep.subr.mxu0 0.0
    %754 = vmatpush2.msra.mxu0 0.0
    %755 = vmatprep.subr.mxu0 0.0
    %756 = vmatpush2.msra.mxu0 0.0
    %757 = vmatprep.subr.mxu0 0.0
    %758 = vmatpush2.msra.mxu0 0.0
    %759 = vmatprep.subr.mxu0 0.0
    %760 = vmatpush2.msra.mxu0 0.0
    %761 = vmatprep.subr.mxu0 0.0
    %762 = vmatpush2.msra.mxu0 0.0
    %763 = vmatprep.subr.mxu0 0.0
    %764 = vmatpush2.msra.mxu0 0.0
    %765 = vmatprep.subr.mxu0 0.0
    %766 = vmatpush2.msra.mxu0 0.0
    %767 = vmatprep.subr.mxu0 0.0
    %768 = vmatpush2.msra.mxu0 0.0
    %769 = vmatprep.subr.mxu0 0.0
    %770 = vmatpush2.msra.mxu0 0.0
    %771 = vmatprep.subr.mxu0 0.0
    %772 = vmatpush2.msra.mxu0 0.0
    %773 = vmatprep.subr.mxu0 0.0
    %774 = vmatpush2.msra.mxu0 0.0
    %775 = vmatprep.subr.mxu0 0.0
    %776 = vmatpush2.msra.mxu0 0.0
    %777 = vmatprep.subr.mxu0 0.0
    %778 = vmatpush2.msra.mxu0 0.0
    %779 = vmatprep.subr.mxu0 0.0
    %780 = vmatpush2.msra.mxu0 0.0
    %781 = vmatprep.mubr.f32.mxu0 0.0
    %782 = vmatmul.mubr.f32.gmra.mxu0 %v676
    %v783 = vpop.f32.mrf.mxu0
    %v784 = vadd.f32 %v715, %v783
    %v785 = vpop.f32.mrf.mxu0
    %786 = vmatprep.mubr.f32.mxu0 0.0
    %787 = vmatmul.mubr.f32.gmra.mxu0 %v677
    %v788 = vpop.f32.mrf.mxu0
    %v789 = vadd.f32 %v715, %v788
    %v790 = vpop.f32.mrf.mxu0
    %791 = vmatprep.mubr.f32.mxu0 0.0
    %792 = vmatmul.mubr.f32.gmra.mxu0 %v678
    %v793 = vpop.f32.mrf.mxu0
    %v794 = vadd.f32 %v715, %v793
    %v795 = vpop.f32.mrf.mxu0
    %796 = vmatprep.mubr.f32.mxu0 0.0
    %797 = vmatmul.mubr.f32.gmra.mxu0 %v679
    %v798 = vpop.f32.mrf.mxu0
    %v799 = vadd.f32 %v715, %v798
    %v800 = vpop.f32.mrf.mxu0
    %801 = vmatprep.mubr.f32.mxu0 0.0
    %802 = vmatmul.mubr.f32.gmra.mxu0 %v680
    %v803 = vpop.f32.mrf.mxu0
    %v804 = vadd.f32 %v715, %v803
    %v805 = vpop.f32.mrf.mxu0
    %806 = vmatprep.mubr.f32.mxu0 0.0
    %807 = vmatmul.mubr.f32.gmra.mxu0 %v681
    %v808 = vpop.f32.mrf.mxu0
    %v809 = vadd.f32 %v715, %v808
    %v810 = vpop.f32.mrf.mxu0
    %811 = vmatprep.mubr.f32.mxu0 0.0
    %812 = vmatmul.mubr.f32.gmra.mxu0 %v682
    %v813 = vpop.f32.mrf.mxu0
    %v814 = vadd.f32 %v715, %v813
    %v815 = vpop.f32.mrf.mxu0
    %816 = vmatprep.mubr.f32.mxu0 0.0
    %817 = vmatmul.mubr.f32.gmra.mxu0 %v683
    %v818 = vpop.f32.mrf.mxu0
    %v819 = vadd.f32 %v715, %v818
    %v820 = vpop.f32.mrf.mxu0
    %821 = vmatprep.mubr.f32.mxu0 0.0
    %822 = vmatmul.mubr.f32.gmra.mxu0 %v684
    %v823 = vpop.f32.mrf.mxu0
    %v824 = vadd.f32 %v715, %v823
    %v825 = vpop.f32.mrf.mxu0
    %826 = vmatprep.mubr.f32.mxu0 0.0
    %827 = vmatmul.mubr.f32.gmra.mxu0 %v685
    %v828 = vpop.f32.mrf.mxu0
    %v829 = vadd.f32 %v715, %v828
    %v830 = vpop.f32.mrf.mxu0
    %831 = vmatprep.mubr.f32.mxu0 0.0
    %832 = vmatmul.mubr.f32.gmra.mxu0 %v686
    %v833 = vpop.f32.mrf.mxu0
    %v834 = vadd.f32 %v715, %v833
    %v835 = vpop.f32.mrf.mxu0
    %836 = vmatprep.mubr.f32.mxu0 0.0
    %837 = vmatmul.mubr.f32.gmra.mxu0 %v687
    %v838 = vpop.f32.mrf.mxu0
    %v839 = vadd.f32 %v715, %v838
    %v840 = vpop.f32.mrf.mxu0
    %841 = vmatprep.mubr.f32.mxu0 0.0
    %842 = vmatmul.mubr.f32.gmra.mxu0 %v688
    %v843 = vpop.f32.mrf.mxu0
    %v844 = vadd.f32 %v715, %v843
    %v845 = vpop.f32.mrf.mxu0
    %846 = vmatprep.mubr.f32.mxu0 0.0
    %847 = vmatmul.mubr.f32.gmra.mxu0 %v689
    %v848 = vpop.f32.mrf.mxu0
    %v849 = vadd.f32 %v715, %v848
    %v850 = vpop.f32.mrf.mxu0
    %851 = vmatprep.mubr.f32.mxu0 0.0
    %852 = vmatmul.mubr.f32.gmra.mxu0 %v690
    %v853 = vpop.f32.mrf.mxu0
    %v854 = vadd.f32 %v715, %v853
    %v855 = vpop.f32.mrf.mxu0
    %856 = vmatprep.mubr.f32.mxu0 0.0
    %857 = vmatmul.mubr.f32.gmra.mxu0 %v691
    %v858 = vpop.f32.mrf.mxu0
    %v859 = vadd.f32 %v715, %v858
    %v860 = vpop.f32.mrf.mxu0
    %861 = vdwg.mxu0
    %862 = vst [vmem:[#allocation8] sm:$0xff] %v784
    %863 = vst [vmem:[#allocation8 + $0x8] sm:$0xff] %v789
    %864 = vst [vmem:[#allocation8 + $0x10] sm:$0xff] %v794
    %865 = vst [vmem:[#allocation8 + $0x18] sm:$0xff] %v799
    %866 = vst [vmem:[#allocation8 + $0x20] sm:$0xff] %v804
    %867 = vst [vmem:[#allocation8 + $0x28] sm:$0xff] %v809
    %868 = vst [vmem:[#allocation8 + $0x30] sm:$0xff] %v814
    %869 = vst [vmem:[#allocation8 + $0x38] sm:$0xff] %v819
    %870 = vst [vmem:[#allocation8 + $0x40] sm:$0xff] %v824
    %871 = vst [vmem:[#allocation8 + $0x48] sm:$0xff] %v829
    %872 = vst [vmem:[#allocation8 + $0x50] sm:$0xff] %v834
    %873 = vst [vmem:[#allocation8 + $0x58] sm:$0xff] %v839
    %874 = vst [vmem:[#allocation8 + $0x60] sm:$0xff] %v844
    %875 = vst [vmem:[#allocation8 + $0x68] sm:$0xff] %v849
    %876 = vst [vmem:[#allocation8 + $0x70] sm:$0xff] %v854
    %877 = vst [vmem:[#allocation8 + $0x78] sm:$0xff] %v859
    // Predicated region
    $region26: #{tpu_custom_call.1} parent=1 // pred_check
      _
    $region27: #{tpu_custom_call.1} parent=1 // pred_check_branch
      %879 = sbr.rel (0) target = $region29
    $region28: #{tpu_custom_call.1} parent=1 // pred_region
      %s881 = ssub.s32 2048, 2048
      %882 = vsyncadd [#allocation4], %s881
      %s883 = sshll.u32 [#allocation8], 4
      %s884 = int_to_ptr.vmem [resolvable:$true] %s883
      %889 = dma.vmem_to_hbm [thread:$0]  %s884, 2048, %s3, [#allocation4], 128, 128, 8
    $region29: #{tpu_custom_call.1} parent=1 // pred_fallthru
      _
    // Predicated region
    $region30: #{tpu_custom_call.1} parent=1 // pred_check
      _
    $region31: #{tpu_custom_call.1} parent=1 // pred_check_branch
      %891 = sbr.rel (0) target = $region33
    $region32: #{tpu_custom_call.1} parent=1 // pred_region
      %892 = dma.done [#allocation4], 2048
    $region33: #{tpu_custom_call.1} parent=1 // pred_fallthru
      _
    %893 = vsyncpa [#allocation3], 1
    %894 = vsyncpa [#allocation6], 1
    %895 = vsyncpa [#allocation4], 1

</llo_original>
